<compile_context>
chip_gen: v5e
topology: v5e:2x2
jax: 0.10.0
libtpu: 0.0.40
codegen_flags: <defaults>
</compile_context>

<pallas_src>
import math

import jax
import jax.numpy as jnp
from jax.experimental import pallas as pl
from jax.experimental.pallas import tpu as pltpu

EPS = 1e-9


# ---------------------------------------------------------------------------
# Pallas kernel: fused (x + y) -> layernorm (unbiased std) -> gamma * . + beta
# ---------------------------------------------------------------------------
def add_layernorm_kernel(x_ref, y_ref, gamma_ref, beta_ref, o_ref):
    # x,y : [TM, F]   gamma,beta : [1, F]   o : [TM, F]
    x = x_ref[...].astype(jnp.float32)
    y = y_ref[...].astype(jnp.float32)
    c = x + y

    f = c.shape[-1]
    inv_f = jnp.float32(1.0 / f)

    # Two independent row reductions -> back-to-back on the XLU.
    s1 = jnp.sum(c, axis=-1, keepdims=True)            # [TM, 1]
    s2 = jnp.sum(c * c, axis=-1, keepdims=True)         # [TM, 1]
    mean = s1 * inv_f
    # Unbiased (N-1) variance, matching torch.Tensor.std default; clamp >= 0
    # to guard the one-pass formula against cancellation.
    var = jnp.maximum(s2 - s1 * mean, 0.0) / jnp.float32(f - 1)
    std = jnp.sqrt(var)
    # eps is added to std (not var), exactly like the PyTorch module.
    inv = pl.reciprocal(std + EPS, approx=True)          # EUP slot, ~free

    out = gamma_ref[...] * ((c - mean) * inv) + beta_ref[...]
    o_ref[...] = out.astype(o_ref.dtype)


# ---------------------------------------------------------------------------
# Wrapper
# ---------------------------------------------------------------------------
def _round_up(x, m):
    return ((x + m - 1) // m) * m


def pallas_layer_normalization(input1, input2, gamma, beta):
    """input1/input2: [..., F]; gamma/beta: [F]. Returns gamma*LN(input1+input2)+beta."""
    orig_shape = input1.shape
    F = int(orig_shape[-1])
    assert F >= 2, "unbiased std (N-1) needs at least 2 features"
    M = int(math.prod(orig_shape[:-1])) if len(orig_shape) > 1 else 1

    # Flattening leading dims is a metadata-only reshape (no HBM copy).
    x2 = input1.reshape(M, F)
    y2 = input2.reshape(M, F)
    g2 = gamma.reshape(1, F).astype(jnp.float32)
    b2 = beta.reshape(1, F).astype(jnp.float32)

    # --- Row-tile sizing (HBM-bandwidth-bound kernel) ------------------------
    itemsize = jnp.dtype(input1.dtype).itemsize
    TARGET_STEP_BYTES = 4 * 1024 * 1024   # ~4 MiB HBM traffic per grid step
    VMEM_BUDGET = 24 * 1024 * 1024        # (2 in + 1 out) x double-buffer, f32

    tm = max(8, TARGET_STEP_BYTES // (3 * F * itemsize))
    tm = min(tm, max(8, VMEM_BUDGET // (6 * F * 4)))
    # Keep >= ~4 grid steps for large M so the 'parallel' axis can feed both
    # TensorCores on v7x (no-op on single-TC v5e/v6e and on tiny problems).
    MIN_STEPS = 4
    if M >= MIN_STEPS * 8:
        tm = min(tm, max(8, (M // MIN_STEPS // 8) * 8))
    tm = min(tm, _round_up(M, 8))          # never bigger than the whole problem
    tm = max(8, (tm // 8) * 8)             # sublane-aligned

    # Ragged last block: Pallas pads the reads and masks the OOB writes; rows
    # are independent, so the padded-tail rows never affect real outputs.
    grid = (pl.cdiv(M, tm),)

    out = pl.pallas_call(
        add_layernorm_kernel,
        out_shape=jax.ShapeDtypeStruct((M, F), input1.dtype),
        grid=grid,
        in_specs=[
            pl.BlockSpec((tm, F), lambda i: (i, 0)),
            pl.BlockSpec((tm, F), lambda i: (i, 0)),
            pl.BlockSpec((1, F), lambda i: (0, 0)),
            pl.BlockSpec((1, F), lambda i: (0, 0)),
        ],
        out_specs=pl.BlockSpec((tm, F), lambda i: (i, 0)),
        compiler_params=pltpu.CompilerParams(
            dimension_semantics=("parallel",),
            vmem_limit_bytes=32 * 1024 * 1024,
        ),
    )(x2, y2, g2, b2)

    return out.reshape(orig_shape)


# ---------------------------------------------------------------------------
# Pure-JAX reference (mirrors the PyTorch semantics, incl. unbiased std)
# ---------------------------------------------------------------------------
def reference_forward(input1, input2, gamma, beta):
    c = input1 + input2
    mean = jnp.mean(c, axis=-1, keepdims=True)
    d = c - mean
    var = jnp.sum(d * d, axis=-1, keepdims=True) / (c.shape[-1] - 1)
    std = jnp.sqrt(var)
    return gamma * (d / (std + EPS)) + beta


# ---------------------------------------------------------------------------
if __name__ == "__main__":
    # Small shapes consistent with the module: batch=2, seq=8, in_dim=128
    # (feature dim a multiple of 128 so the output slab is lane-dense).
    batch, seq, in_dim = 2, 8, 128

    root = jax.random.PRNGKey(0)
    k1, k2, kg, kb = jax.random.split(root, 4)

    input1 = jax.random.normal(k1, (batch, seq, in_dim), jnp.float32)
    input2 = jax.random.normal(k2, (batch, seq, in_dim), jnp.float32)
    # Module initializes gamma=1, beta=0; perturb them so the affine path is exercised.
    gamma = 1.0 + 0.1 * jax.random.normal(kg, (in_dim,), jnp.float32)
    beta = 0.1 * jax.random.normal(kb, (in_dim,), jnp.float32)

    out = pallas_layer_normalization(input1, input2, gamma, beta)
    out = jax.block_until_ready(out)

    ref = reference_forward(input1, input2, gamma, beta)
    assert out.shape == (batch, seq, in_dim)
    # Tolerance accounts for the EUP approx-reciprocal used for 1/(std+eps).
    assert jnp.allclose(out, ref, atol=2e-3, rtol=2e-3), "Pallas kernel mismatch vs reference"

    print("KERNEL_OK")
</pallas_src>

<mosaic_0001>
module attributes {stable_mosaic.version = 11 : i64} {
  func.func @add_layernorm_kernel(%arg0: i32, %arg1: memref<16x128xf32, #tpu.memory_space<vmem>>, %arg2: memref<16x128xf32, #tpu.memory_space<vmem>>, %arg3: memref<1x128xf32, #tpu.memory_space<vmem>>, %arg4: memref<1x128xf32, #tpu.memory_space<vmem>>, %arg5: memref<16x128xf32, #tpu.memory_space<vmem>>) attributes {dimension_semantics = [#tpu.dimension_semantics<parallel>], iteration_bounds = array<i64: 1>, scalar_prefetch = 0 : i64, scratch_operands = 0 : i64, tpu.core_type = #tpu.core_type<tc>, window_params = [{transform_indices = @transform_0, window_bounds = array<i64: 16, 128>}, {transform_indices = @transform_1, window_bounds = array<i64: 16, 128>}, {pipeline_mode = #tpu.pipeline_mode<synchronous>, transform_indices = @transform_2, window_bounds = array<i64: 1, 128>}, {pipeline_mode = #tpu.pipeline_mode<synchronous>, transform_indices = @transform_3, window_bounds = array<i64: 1, 128>}, {transform_indices = @transform_4, window_bounds = array<i64: 16, 128>}]} {
    %c0 = arith.constant 0 : index
    %c0_0 = arith.constant 0 : index
    %0 = vector.load %arg1[%c0, %c0_0] : memref<16x128xf32, #tpu.memory_space<vmem>>, vector<16x128xf32>
    %c0_1 = arith.constant 0 : index
    %c0_2 = arith.constant 0 : index
    %1 = vector.load %arg2[%c0_1, %c0_2] : memref<16x128xf32, #tpu.memory_space<vmem>>, vector<16x128xf32>
    %2 = arith.addf %0, %1 : vector<16x128xf32>
    %cst = arith.constant dense<0.000000e+00> : vector<16xf32>
    %3 = vector.multi_reduction <add>, %2, %cst [1] : vector<16x128xf32> to vector<16xf32>
    %4 = vector.shape_cast %3 : vector<16xf32> to vector<16x1xf32>
    %5 = arith.mulf %2, %2 : vector<16x128xf32>
    %cst_3 = arith.constant dense<0.000000e+00> : vector<16xf32>
    %6 = vector.multi_reduction <add>, %5, %cst_3 [1] : vector<16x128xf32> to vector<16xf32>
    %7 = vector.shape_cast %6 : vector<16xf32> to vector<16x1xf32>
    %cst_4 = arith.constant 7.812500e-03 : f32
    %8 = vector.broadcast %cst_4 : f32 to vector<16x1xf32>
    %9 = arith.mulf %4, %8 : vector<16x1xf32>
    %10 = arith.mulf %4, %9 : vector<16x1xf32>
    %11 = arith.subf %7, %10 : vector<16x1xf32>
    %cst_5 = arith.constant 0.000000e+00 : f32
    %12 = vector.broadcast %cst_5 : f32 to vector<16x1xf32>
    %13 = arith.maximumf %11, %12 : vector<16x1xf32>
    %cst_6 = arith.constant 1.270000e+02 : f32
    %14 = vector.broadcast %cst_6 : f32 to vector<16x1xf32>
    %15 = arith.divf %13, %14 : vector<16x1xf32>
    %16 = math.sqrt %15 : vector<16x1xf32>
    %cst_7 = arith.constant 9.99999971E-10 : f32
    %17 = vector.broadcast %cst_7 : f32 to vector<16x1xf32>
    %18 = arith.addf %16, %17 : vector<16x1xf32>
    %19 = tpu.reciprocal %18 {approx = true} : vector<16x1xf32> -> vector<16x1xf32>
    %c0_8 = arith.constant 0 : index
    %c0_9 = arith.constant 0 : index
    %20 = vector.load %arg3[%c0_8, %c0_9] : memref<1x128xf32, #tpu.memory_space<vmem>>, vector<1x128xf32>
    %21 = vector.broadcast %9 : vector<16x1xf32> to vector<16x128xf32>
    %22 = arith.subf %2, %21 : vector<16x128xf32>
    %23 = vector.broadcast %19 : vector<16x1xf32> to vector<16x128xf32>
    %24 = arith.mulf %22, %23 : vector<16x128xf32>
    %25 = vector.broadcast %20 : vector<1x128xf32> to vector<16x128xf32>
    %26 = arith.mulf %25, %24 : vector<16x128xf32>
    %c0_10 = arith.constant 0 : index
    %c0_11 = arith.constant 0 : index
    %27 = vector.load %arg4[%c0_10, %c0_11] : memref<1x128xf32, #tpu.memory_space<vmem>>, vector<1x128xf32>
    %28 = vector.broadcast %27 : vector<1x128xf32> to vector<16x128xf32>
    %29 = arith.addf %26, %28 : vector<16x128xf32>
    %c0_12 = arith.constant 0 : index
    %c0_13 = arith.constant 0 : index
    %30 = vector.load %arg5[%c0_12, %c0_13] : memref<16x128xf32, #tpu.memory_space<vmem>>, vector<16x128xf32>
    tpu.vector_store %arg5[%c0_12, %c0_13], %29 {strides = array<i32>} : memref<16x128xf32, #tpu.memory_space<vmem>>, vector<16x128xf32>,
    return
  }
  func.func @transform_0(%arg0: i32) -> (i32, i32) {
    %c0_i32 = arith.constant 0 : i32
    %c0_i32_0 = arith.constant 0 : i32
    return %arg0, %c0_i32 : i32, i32
  }
  func.func @transform_1(%arg0: i32) -> (i32, i32) {
    %c0_i32 = arith.constant 0 : i32
    %c0_i32_0 = arith.constant 0 : i32
    return %arg0, %c0_i32 : i32, i32
  }
  func.func @transform_2(%arg0: i32) -> (i32, i32) {
    %c0_i32 = arith.constant 0 : i32
    %c0_i32_0 = arith.constant 0 : i32
    %c0_i32_1 = arith.constant 0 : i32
    return %c0_i32, %c0_i32_0 : i32, i32
  }
  func.func @transform_3(%arg0: i32) -> (i32, i32) {
    %c0_i32 = arith.constant 0 : i32
    %c0_i32_0 = arith.constant 0 : i32
    %c0_i32_1 = arith.constant 0 : i32
    return %c0_i32, %c0_i32_0 : i32, i32
  }
  func.func @transform_4(%arg0: i32) -> (i32, i32) {
    %c0_i32 = arith.constant 0 : i32
    %c0_i32_0 = arith.constant 0 : i32
    return %arg0, %c0_i32 : i32, i32
  }
}

</mosaic_0001>

<llo_original>
// kernel: tpu_custom_call.1
$region0: #{tpu_custom_call.1}
  #allocation0 [shape = 'u32[]', space=smem, size = 0x4, offset = 0x4, fixed_abs, tag = 'smem constant byte address 0x4 - core index']
  #allocation1 [shape = 'u32[72,128]{1,0:T(1,128)}', space=vmem, size = 0x9000, scoped, tag = 'internal scratch']
  %s0 = inlined_call_operand.hbm [shape: f32[16,128], index: 0, kind: input, shape index: {}]
  %s1 = inlined_call_operand.hbm [shape: f32[16,128], index: 1, kind: input, shape index: {}]
  %s2 = inlined_call_operand.vmem [shape: f32[1,128], index: 2, kind: input, shape index: {}]
  %s3 = inlined_call_operand.vmem [shape: f32[1,128], index: 3, kind: input, shape index: {}]
  %s4 = inlined_call_operand.hbm [shape: f32[16,128], index: 4, kind: output, shape index: {}]
  %s5 = sld [smem:[#allocation0]]
  $region34: #{tpu_custom_call.1} parent=0
    _
  %s7 = ssub.s32 1, %s5
  %s8 = scalar_select 0, %s7, %s5
  $region1: #{tpu_custom_call.1} parent=0
    #allocation2 [shape = 'u8[8192]{0}', space=vmem, size = 0x2000, scoped, tag = 'input window, operand 0, single buffered']
    #allocation3 [shape = 's32[1]{0}', space=sflag, size = 0x4, scoped, tag = 'scoped memory for tpu_custom_call.1']
    #allocation4 [shape = 's32[1]{0}', space=sflag, size = 0x4, scoped, tag = 'scoped memory for tpu_custom_call.1']
    #allocation5 [shape = 'u8[8192]{0}', space=vmem, size = 0x2000, scoped, tag = 'input window, operand 1, single buffered']
    #allocation6 [shape = 's32[1]{0}', space=sflag, size = 0x4, scoped, tag = 'scoped memory for tpu_custom_call.1']
    #allocation7 [shape = 'u8[8192]{0}', space=vmem, size = 0x2000, scoped, tag = 'output window, operand 0, single buffered']
    %9 = vsyncpa [#allocation3], 0
    %10 = vsyncpa [#allocation6], 0
    %11 = vsyncpa [#allocation4], 0
    // Predicated region
    $region2: #{tpu_custom_call.1} parent=1 // pred_check
      _
    $region3: #{tpu_custom_call.1} parent=1 // pred_check_branch
      %13 = sbr.rel (0) target = $region5
    $region4: #{tpu_custom_call.1} parent=1 // pred_region
      %15 = vsyncadd [#allocation3], 0
      %s16 = sshll.u32 %s0, 4
      %s17 = int_to_ptr.hbm [resolvable:$true] %s16
      %s18 = sshll.u32 [#allocation2], 4
      %s19 = int_to_ptr.vmem [resolvable:$true] %s18
      %24 = dma.hbm_to_vmem [thread:$0]  %s17, 256, %s19, [#allocation3], 128, 128, 8
    $region5: #{tpu_custom_call.1} parent=1 // pred_fallthru
      _
    // Predicated region
    $region6: #{tpu_custom_call.1} parent=1 // pred_check
      _
    $region7: #{tpu_custom_call.1} parent=1 // pred_check_branch
      %26 = sbr.rel (0) target = $region9
    $region8: #{tpu_custom_call.1} parent=1 // pred_region
      %28 = vsyncadd [#allocation6], 0
      %s29 = sshll.u32 %s1, 4
      %s30 = int_to_ptr.hbm [resolvable:$true] %s29
      %s31 = sshll.u32 [#allocation5], 4
      %s32 = int_to_ptr.vmem [resolvable:$true] %s31
      %37 = dma.hbm_to_vmem [thread:$0]  %s30, 256, %s32, [#allocation6], 128, 128, 8
    $region9: #{tpu_custom_call.1} parent=1 // pred_fallthru
      _
    // Predicated region
    $region10: #{tpu_custom_call.1} parent=1 // pred_check
      _
    $region11: #{tpu_custom_call.1} parent=1 // pred_check_branch
      %39 = sbr.rel (0) target = $region13
    $region12: #{tpu_custom_call.1} parent=1 // pred_region
      _
    $region13: #{tpu_custom_call.1} parent=1 // pred_fallthru
      _
    // Predicated region
    $region14: #{tpu_custom_call.1} parent=1 // pred_check
      _
    $region15: #{tpu_custom_call.1} parent=1 // pred_check_branch
      %41 = sbr.rel (0) target = $region17
    $region16: #{tpu_custom_call.1} parent=1 // pred_region
      _
    $region17: #{tpu_custom_call.1} parent=1 // pred_fallthru
      _
    // Predicated region
    $region18: #{tpu_custom_call.1} parent=1 // pred_check
      _
    $region19: #{tpu_custom_call.1} parent=1 // pred_check_branch
      %43 = sbr.rel (0) target = $region21
    $region20: #{tpu_custom_call.1} parent=1 // pred_region
      %45 = dma.done [#allocation3], 256
    $region21: #{tpu_custom_call.1} parent=1 // pred_fallthru
      _
    // Predicated region
    $region22: #{tpu_custom_call.1} parent=1 // pred_check
      _
    $region23: #{tpu_custom_call.1} parent=1 // pred_check_branch
      %47 = sbr.rel (0) target = $region25
    $region24: #{tpu_custom_call.1} parent=1 // pred_region
      %49 = dma.done [#allocation6], 256
    $region25: #{tpu_custom_call.1} parent=1 // pred_fallthru
      _
    %v50 = vld [vmem:[#allocation2] sm:$0xff]
    %v51 = vld [vmem:[#allocation2 + $0x8] sm:$0xff]
    %v52 = vld [vmem:[#allocation5] sm:$0xff]
    %v53 = vld [vmem:[#allocation5 + $0x8] sm:$0xff]
    %v54 = vadd.f32 %v50, %v52
    %v55 = vadd.f32 %v51, %v53
    %56 = vadd.xlane.f32.xlu0 %v54
    %v57 = vpop.xlane.xlu0 %56
    %58 = vadd.xlane.f32.xlu0 %v55
    %v59 = vpop.xlane.xlu0 %58
    %v60 = vmul.f32 %v54, %v54
    %v61 = vmul.f32 %v55, %v55
    %62 = vadd.xlane.f32.xlu0 %v60
    %v63 = vpop.xlane.xlu0 %62
    %64 = vadd.xlane.f32.xlu0 %v61
    %v65 = vpop.xlane.xlu0 %64
    %v66 = vmul.f32 %v57, 0.0078125
    %v67 = vmul.f32 %v59, 0.0078125
    %v68 = vmul.f32 %v57, %v66
    %v69 = vmul.f32 %v59, %v67
    %v70 = vsub.f32 %v63, %v68
    %v71 = vsub.f32 %v65, %v69
    %v72 = vmax.f32 %v70, 0.0
    %v73 = vmax.f32 %v71, 0.0
    %v74 = vrcp.pop 127.0
    %v75 = vmul.f32 127.0, %v74
    %v76 = vsub.f32 1.0, %v75
    %v77 = vmul.f32 %v74, %v76
    %v78 = vadd.f32 %v74, %v77
    %vm79 = vweird.f32 %v74
    %v80 = vsel %vm79, %v74, %v78
    %v81 = vmul.f32 %v72, %v80
    %v82 = vmul.f32 %v73, %v80
    %v83 = vrsqrt.pop %v81
    %v84 = vmul.f32 %v83, %v81
    %v85 = vmul.f32 %v84, %v83
    %v86 = vmul.f32 0.5, %v85
    %v87 = vsub.f32 1.5, %v86
    %v88 = vmul.f32 %v83, %v87
    %v89 = vmul.f32 %v81, %v88
    %vm90 = vcmp.eq.f32.partialorder %v81, inf
    %v91 = vsel %vm90, %v81, %v89
    %vm92 = vcmp.eq.f32.partialorder %v81, 0.0
    %v93 = vand.u32 %v81, 2147483648
    %v94 = vsel %vm92, %v93, %v91
    %v95 = vrsqrt.pop %v82
    %v96 = vmul.f32 %v95, %v82
    %v97 = vmul.f32 %v96, %v95
    %v98 = vmul.f32 0.5, %v97
    %v99 = vsub.f32 1.5, %v98
    %v100 = vmul.f32 %v95, %v99
    %v101 = vmul.f32 %v82, %v100
    %vm102 = vcmp.eq.f32.partialorder %v82, inf
    %v103 = vsel %vm102, %v82, %v101
    %vm104 = vcmp.eq.f32.partialorder %v82, 0.0
    %v105 = vand.u32 %v82, 2147483648
    %v106 = vsel %vm104, %v105, %v103
    %v107 = vadd.f32 %v94, 1e-09
    %v108 = vadd.f32 %v106, 1e-09
    %v109 = vrcp.pop %v107
    %v110 = vrcp.pop %v108
    %v111 = vld [vmem:[%s2] sm:$0x1]
    %v112 = vsub.f32 %v54, %v66
    %v113 = vsub.f32 %v55, %v67
    %v114 = vmul.f32 %v112, %v109
    %v115 = vmul.f32 %v113, %v110
    %v117 = vperm.slane %v111, 0
    %v119 = vmul.f32 %v117, %v114
    %v120 = vmul.f32 %v117, %v115
    %v121 = vld [vmem:[%s3] sm:$0x1]
    %v123 = vperm.slane %v121, 0
    %v125 = vadd.f32 %v119, %v123
    %v126 = vadd.f32 %v120, %v123
    %127 = vst [vmem:[#allocation7] sm:$0xff] %v125
    %128 = vst [vmem:[#allocation7 + $0x8] sm:$0xff] %v126
    // Predicated region
    $region26: #{tpu_custom_call.1} parent=1 // pred_check
      _
    $region27: #{tpu_custom_call.1} parent=1 // pred_check_branch
      %130 = sbr.rel (0) target = $region29
    $region28: #{tpu_custom_call.1} parent=1 // pred_region
      %132 = vsyncadd [#allocation4], 0
      %s133 = sshll.u32 [#allocation7], 4
      %s134 = int_to_ptr.vmem [resolvable:$true] %s133
      %s135 = sshll.u32 %s4, 4
      %s136 = int_to_ptr.hbm [resolvable:$true] %s135
      %141 = dma.vmem_to_hbm [thread:$0]  %s134, 256, %s136, [#allocation4], 128, 128, 8
    $region29: #{tpu_custom_call.1} parent=1 // pred_fallthru
      _
    // Predicated region
    $region30: #{tpu_custom_call.1} parent=1 // pred_check
      _
    $region31: #{tpu_custom_call.1} parent=1 // pred_check_branch
      %143 = sbr.rel (0) target = $region33
    $region32: #{tpu_custom_call.1} parent=1 // pred_region
      %145 = dma.done [#allocation4], 256
    $region33: #{tpu_custom_call.1} parent=1 // pred_fallthru
      _
    %146 = vsyncpa [#allocation3], 1
    %147 = vsyncpa [#allocation6], 1
    %148 = vsyncpa [#allocation4], 1

</llo_original>
